<compile_context>
chip_gen: v7x
topology: tpu7x:2x2x1
jax: 0.10.0
libtpu: 0.0.40
codegen_flags: <defaults>
</compile_context>

<pallas_src>
import jax
import jax.numpy as jnp
from jax.experimental import pallas as pl
from jax.experimental.pallas import tpu as pltpu


def _round_up(x, m):
    return ((x + m - 1) // m) * m


# ---------------------------------------------------------------------------
# Projection matrices + validhints (exact port of the visible forward body).
# Launch-overhead-dominated micro-ops -> plain XLA instead of extra pallas_calls.
# ---------------------------------------------------------------------------
def build_proj_matrices(intrinsics, extrinsics):
    intr = intrinsics.astype(jnp.float32)
    extr = extrinsics.astype(jnp.float32)
    proj = {}
    for i in range(4):
        K = intr.at[..., :2, :].set(intr[..., :2, :] / float(2 ** i))
        top = jnp.einsum("bvik,bvkj->bvij", K, extr[..., :3, :4])
        proj[f"stage_{i}"] = extr.at[..., :3, :4].set(top)
    return proj


def compute_validhints(hints):
    return (hints > 0).astype(jnp.float32)


# ---------------------------------------------------------------------------
# Pallas kernel: simplified depth head (hot path).
#   1x1 "conv" feature -> cost over depth hypotheses -> softmax expectation.
# TODO(synk): the real CascadeMVSNet internals (FPN 2D-conv features,
# differentiable homography warping / grid_sample, 3D-CNN cost-volume
# regularization, multi-stage refinement) are not provided in the given source;
# this Pallas head implements the MVSNet-style softmax depth regression only.
# ---------------------------------------------------------------------------
def _depth_head_kernel(x_ref, wft_ref, wdt_ref, dv_ref, o_ref):
    # x_ref : (C, TP)  bf16   image tile, pixels lane-dense
    # wft_ref: (F, C)  f32    feature weights (transposed)
    # wdt_ref: (D, F)  f32    depth-head weights (transposed)
    # dv_ref : (D, 1)  f32    depth hypotheses for the current batch element
    # o_ref  : (1, TP) f32    regressed depth
    x = x_ref[...].astype(jnp.float32)            # (C, TP)
    wft = wft_ref[...]                            # (F, C)
    wdt = wdt_ref[...]                            # (D, F)
    C = x.shape[0]
    F = wft.shape[0]

    # feat[f, p] = relu(sum_c wf[c, f] * x[c, p])  -- C-term VPU broadcast MAC
    feat = wft[:, 0:1] * x[0:1, :]
    for c in range(1, C):
        feat = feat + wft[:, c:c + 1] * x[c:c + 1, :]
    feat = jnp.maximum(feat, 0.0)                 # (F, TP)

    # cost[d, p] = sum_f wd[f, d] * feat[f, p]    -- F-term VPU broadcast MAC
    cost = wdt[:, 0:1] * feat[0:1, :]
    for f in range(1, F):
        cost = cost + wdt[:, f:f + 1] * feat[f:f + 1, :]
    # cost: (D, TP)

    # softmax over depth hypotheses + expectation; depth_values folded into the
    # reduction (no (D, TP) attn divide), normalized once via EUP approx recip.
    m = jnp.max(cost, axis=0, keepdims=True)      # (1, TP)
    p = jnp.exp(cost - m)                         # (D, TP)  (EUP)
    s = jnp.sum(p, axis=0, keepdims=True)         # (1, TP)
    num = jnp.sum(p * dv_ref[...], axis=0, keepdims=True)   # (1, TP)
    o_ref[...] = num * pl.reciprocal(s, approx=True)


def depth_head(ref_img_nchw, depth_values, wf, wd, tile_p=512):
    """ref_img_nchw: (B, C, H, W); depth_values: (B, D); wf: (C, F); wd: (F, D)."""
    B, C, H, W = ref_img_nchw.shape
    P = H * W
    F = wf.shape[1]
    D = wd.shape[1]

    tile_p = max(128, min(int(tile_p), _round_up(P, 128)))
    P_pad = _round_up(P, tile_p)
    n_tiles = P_pad // tile_p

    # (B, C, P) layout, bf16 DMA payload; pixel axis is the lane axis.
    x = ref_img_nchw.reshape(B, C, P).astype(jnp.bfloat16)
    if P_pad != P:
        x = jnp.pad(x, ((0, 0), (0, 0), (0, P_pad - P)))

    wf_t = jnp.asarray(wf.T, jnp.float32)                      # (F, C)
    wd_t = jnp.asarray(wd.T, jnp.float32)                      # (D, F)
    dv3 = depth_values.astype(jnp.float32)[:, :, None]         # (B, D, 1)

    flops = 2 * B * P * (C * F + F * D + 2 * D)
    bytes_accessed = (B * C * P_pad * 2          # bf16 image
                      + B * P_pad * 4            # f32 output
                      + (F * C + D * F + B * D) * 4)

    out = pl.pallas_call(
        _depth_head_kernel,
        out_shape=jax.ShapeDtypeStruct((B, 1, P_pad), jnp.float32),
        grid=(B, n_tiles),
        in_specs=[
            pl.BlockSpec((None, C, tile_p), lambda b, i: (b, 0, i)),
            pl.BlockSpec((F, C), lambda b, i: (0, 0)),
            pl.BlockSpec((D, F), lambda b, i: (0, 0)),
            pl.BlockSpec((None, D, 1), lambda b, i: (b, 0, 0)),
        ],
        out_specs=pl.BlockSpec((None, 1, tile_p), lambda b, i: (b, 0, i)),
        compiler_params=pltpu.CompilerParams(
            dimension_semantics=("parallel", "parallel")),
        cost_estimate=pl.CostEstimate(
            flops=flops, transcendentals=B * P * D,
            bytes_accessed=bytes_accessed),
    )(x, wf_t, wd_t, dv3)

    return out.reshape(B, P_pad)[:, :P].reshape(B, H, W)


# ---------------------------------------------------------------------------
# SimpleInterfaceNet.forward analogue
# ---------------------------------------------------------------------------
def simple_interface_forward(params, imgs, intrinsics, extrinsics, depth_values,
                             hints=None):
    proj_matrices = build_proj_matrices(intrinsics, extrinsics)
    validhints = compute_validhints(hints) if hints is not None else None
    depth_stage0 = depth_head(imgs[:, 0], depth_values, params["wf"], params["wd"])
    all_outputs = {
        "depth": {"stage_0": depth_stage0},
        "proj_matrices": proj_matrices,
    }
    if validhints is not None:
        all_outputs["validhints"] = validhints
    return depth_stage0, all_outputs


# ---------------------------------------------------------------------------
# Pure-JAX references (correctness checks)
# ---------------------------------------------------------------------------
def _proj_ref(intr, extr):
    outs = []
    for i in range(4):
        K = intr.at[..., :2, :].set(intr[..., :2, :] / (2 ** i))
        top = jnp.einsum("bvik,bvkj->bvij", K, extr[..., :3, :4])
        outs.append(extr.at[..., :3, :4].set(top))
    return jnp.stack(outs)


def _depth_ref(ref_img_nchw, depth_values, wf, wd):
    B, C, H, W = ref_img_nchw.shape
    # Match the kernel's bf16 input rounding; the rest in f32.
    x = ref_img_nchw.astype(jnp.bfloat16).astype(jnp.float32).reshape(B, C, H * W)
    feat = jnp.maximum(jnp.einsum("cf,bcp->bfp", wf, x), 0.0)
    cost = jnp.einsum("fd,bfp->bdp", wd, feat)
    attn = jax.nn.softmax(cost, axis=1)
    return jnp.einsum("bdp,bd->bp", attn, depth_values).reshape(B, H, W)


if __name__ == "__main__":
    key = jax.random.PRNGKey(0)
    k_img, k_t, k_hint, k_wf, k_wd = jax.random.split(key, 5)

    B, V, C, H, W, D, F = 2, 3, 3, 32, 32, 8, 8

    imgs = jax.random.normal(k_img, (B, V, C, H, W), jnp.float32)

    K = jnp.array([[100.0, 0.0, W / 2.0],
                   [0.0, 100.0, H / 2.0],
                   [0.0, 0.0, 1.0]], jnp.float32)
    intrinsics = jnp.broadcast_to(K, (B, V, 3, 3))

    extrinsics = jnp.broadcast_to(jnp.eye(4, dtype=jnp.float32), (B, V, 4, 4))
    extrinsics = extrinsics.at[:, :, :3, 3].set(
        0.1 * jax.random.normal(k_t, (B, V, 3), jnp.float32))

    depth_values = jnp.tile(jnp.linspace(1.0, 8.0, D, dtype=jnp.float32)[None, :],
                            (B, 1))
    hints = jax.random.normal(k_hint, (B, 1, H, W), jnp.float32)

    params = {
        "wf": 0.1 * jax.random.normal(k_wf, (C, F), jnp.float32),
        "wd": 0.1 * jax.random.normal(k_wd, (F, D), jnp.float32),
    }

    fwd = jax.jit(simple_interface_forward)
    depth, outs = fwd(params, imgs, intrinsics, extrinsics, depth_values, hints)
    jax.block_until_ready(depth)
    jax.tree_util.tree_map(jax.block_until_ready, outs)

    # --- correctness checks ---
    proj_all = jnp.stack([outs["proj_matrices"][f"stage_{i}"] for i in range(4)])
    assert jnp.allclose(proj_all, _proj_ref(intrinsics, extrinsics),
                        rtol=1e-5, atol=1e-5)
    assert jnp.allclose(outs["validhints"], (hints > 0).astype(jnp.float32))

    depth_ref = _depth_ref(imgs[:, 0], depth_values, params["wf"], params["wd"])
    assert depth.shape == (B, H, W)
    assert jnp.allclose(depth, depth_ref, rtol=1e-2, atol=1e-2), (
        float(jnp.max(jnp.abs(depth - depth_ref))))

    print("KERNEL_OK")
</pallas_src>

<mosaic_0001>
module attributes {stable_mosaic.version = 11 : i64} {
  func.func @_depth_head_kernel(%arg0: i32, %arg1: i32, %arg2: memref<1x3x512xbf16, #tpu.memory_space<vmem>>, %arg3: memref<8x3xf32, #tpu.memory_space<vmem>>, %arg4: memref<8x8xf32, #tpu.memory_space<vmem>>, %arg5: memref<1x8x1xf32, #tpu.memory_space<vmem>>, %arg6: memref<1x1x512xf32, #tpu.memory_space<vmem>>) attributes {dimension_semantics = [#tpu.dimension_semantics<parallel>, #tpu.dimension_semantics<parallel>], iteration_bounds = array<i64: 2, 2>, scalar_prefetch = 0 : i64, scratch_operands = 0 : i64, tpu.core_type = #tpu.core_type<tc>, window_params = [{transform_indices = @transform_0, window_bounds = array<i64: 1, 3, 512>}, {pipeline_mode = #tpu.pipeline_mode<synchronous>, transform_indices = @transform_1, window_bounds = array<i64: 8, 3>}, {pipeline_mode = #tpu.pipeline_mode<synchronous>, transform_indices = @transform_2, window_bounds = array<i64: 8, 8>}, {transform_indices = @transform_3, window_bounds = array<i64: 1, 8, 1>}, {transform_indices = @transform_4, window_bounds = array<i64: 1, 1, 512>}]} {
    %c0 = arith.constant 0 : index
    %c0_0 = arith.constant 0 : index
    %c0_1 = arith.constant 0 : index
    %0 = vector.load %arg2[%c0, %c0_0, %c0_1] : memref<1x3x512xbf16, #tpu.memory_space<vmem>>, vector<1x3x512xbf16>
    %1 = vector.shape_cast %0 : vector<1x3x512xbf16> to vector<3x512xbf16>
    %2 = arith.extf %1 : vector<3x512xbf16> to vector<3x512xf32>
    %c0_2 = arith.constant 0 : index
    %c0_3 = arith.constant 0 : index
    %3 = vector.load %arg3[%c0_2, %c0_3] : memref<8x3xf32, #tpu.memory_space<vmem>>, vector<8x3xf32>
    %c0_4 = arith.constant 0 : index
    %c0_5 = arith.constant 0 : index
    %4 = vector.load %arg4[%c0_4, %c0_5] : memref<8x8xf32, #tpu.memory_space<vmem>>, vector<8x8xf32>
    %5 = vector.extract_strided_slice %3 {offsets = [0, 0], sizes = [8, 1], strides = [1, 1]} : vector<8x3xf32> to vector<8x1xf32>
    %6 = vector.extract_strided_slice %2 {offsets = [0, 0], sizes = [1, 512], strides = [1, 1]} : vector<3x512xf32> to vector<1x512xf32>
    %7 = vector.broadcast %5 : vector<8x1xf32> to vector<8x512xf32>
    %8 = vector.broadcast %6 : vector<1x512xf32> to vector<8x512xf32>
    %9 = arith.mulf %7, %8 : vector<8x512xf32>
    %10 = vector.extract_strided_slice %3 {offsets = [0, 1], sizes = [8, 1], strides = [1, 1]} : vector<8x3xf32> to vector<8x1xf32>
    %11 = vector.extract_strided_slice %2 {offsets = [1, 0], sizes = [1, 512], strides = [1, 1]} : vector<3x512xf32> to vector<1x512xf32>
    %12 = vector.broadcast %10 : vector<8x1xf32> to vector<8x512xf32>
    %13 = vector.broadcast %11 : vector<1x512xf32> to vector<8x512xf32>
    %14 = arith.mulf %12, %13 : vector<8x512xf32>
    %15 = arith.addf %9, %14 : vector<8x512xf32>
    %16 = vector.extract_strided_slice %3 {offsets = [0, 2], sizes = [8, 1], strides = [1, 1]} : vector<8x3xf32> to vector<8x1xf32>
    %17 = vector.extract_strided_slice %2 {offsets = [2, 0], sizes = [1, 512], strides = [1, 1]} : vector<3x512xf32> to vector<1x512xf32>
    %18 = vector.broadcast %16 : vector<8x1xf32> to vector<8x512xf32>
    %19 = vector.broadcast %17 : vector<1x512xf32> to vector<8x512xf32>
    %20 = arith.mulf %18, %19 : vector<8x512xf32>
    %21 = arith.addf %15, %20 : vector<8x512xf32>
    %cst = arith.constant 0.000000e+00 : f32
    %22 = vector.broadcast %cst : f32 to vector<8x512xf32>
    %23 = arith.maximumf %21, %22 : vector<8x512xf32>
    %24 = vector.extract_strided_slice %4 {offsets = [0, 0], sizes = [8, 1], strides = [1, 1]} : vector<8x8xf32> to vector<8x1xf32>
    %25 = vector.extract_strided_slice %23 {offsets = [0, 0], sizes = [1, 512], strides = [1, 1]} : vector<8x512xf32> to vector<1x512xf32>
    %26 = vector.broadcast %24 : vector<8x1xf32> to vector<8x512xf32>
    %27 = vector.broadcast %25 : vector<1x512xf32> to vector<8x512xf32>
    %28 = arith.mulf %26, %27 : vector<8x512xf32>
    %29 = vector.extract_strided_slice %4 {offsets = [0, 1], sizes = [8, 1], strides = [1, 1]} : vector<8x8xf32> to vector<8x1xf32>
    %30 = vector.extract_strided_slice %23 {offsets = [1, 0], sizes = [1, 512], strides = [1, 1]} : vector<8x512xf32> to vector<1x512xf32>
    %31 = vector.broadcast %29 : vector<8x1xf32> to vector<8x512xf32>
    %32 = vector.broadcast %30 : vector<1x512xf32> to vector<8x512xf32>
    %33 = arith.mulf %31, %32 : vector<8x512xf32>
    %34 = arith.addf %28, %33 : vector<8x512xf32>
    %35 = vector.extract_strided_slice %4 {offsets = [0, 2], sizes = [8, 1], strides = [1, 1]} : vector<8x8xf32> to vector<8x1xf32>
    %36 = vector.extract_strided_slice %23 {offsets = [2, 0], sizes = [1, 512], strides = [1, 1]} : vector<8x512xf32> to vector<1x512xf32>
    %37 = vector.broadcast %35 : vector<8x1xf32> to vector<8x512xf32>
    %38 = vector.broadcast %36 : vector<1x512xf32> to vector<8x512xf32>
    %39 = arith.mulf %37, %38 : vector<8x512xf32>
    %40 = arith.addf %34, %39 : vector<8x512xf32>
    %41 = vector.extract_strided_slice %4 {offsets = [0, 3], sizes = [8, 1], strides = [1, 1]} : vector<8x8xf32> to vector<8x1xf32>
    %42 = vector.extract_strided_slice %23 {offsets = [3, 0], sizes = [1, 512], strides = [1, 1]} : vector<8x512xf32> to vector<1x512xf32>
    %43 = vector.broadcast %41 : vector<8x1xf32> to vector<8x512xf32>
    %44 = vector.broadcast %42 : vector<1x512xf32> to vector<8x512xf32>
    %45 = arith.mulf %43, %44 : vector<8x512xf32>
    %46 = arith.addf %40, %45 : vector<8x512xf32>
    %47 = vector.extract_strided_slice %4 {offsets = [0, 4], sizes = [8, 1], strides = [1, 1]} : vector<8x8xf32> to vector<8x1xf32>
    %48 = vector.extract_strided_slice %23 {offsets = [4, 0], sizes = [1, 512], strides = [1, 1]} : vector<8x512xf32> to vector<1x512xf32>
    %49 = vector.broadcast %47 : vector<8x1xf32> to vector<8x512xf32>
    %50 = vector.broadcast %48 : vector<1x512xf32> to vector<8x512xf32>
    %51 = arith.mulf %49, %50 : vector<8x512xf32>
    %52 = arith.addf %46, %51 : vector<8x512xf32>
    %53 = vector.extract_strided_slice %4 {offsets = [0, 5], sizes = [8, 1], strides = [1, 1]} : vector<8x8xf32> to vector<8x1xf32>
    %54 = vector.extract_strided_slice %23 {offsets = [5, 0], sizes = [1, 512], strides = [1, 1]} : vector<8x512xf32> to vector<1x512xf32>
    %55 = vector.broadcast %53 : vector<8x1xf32> to vector<8x512xf32>
    %56 = vector.broadcast %54 : vector<1x512xf32> to vector<8x512xf32>
    %57 = arith.mulf %55, %56 : vector<8x512xf32>
    %58 = arith.addf %52, %57 : vector<8x512xf32>
    %59 = vector.extract_strided_slice %4 {offsets = [0, 6], sizes = [8, 1], strides = [1, 1]} : vector<8x8xf32> to vector<8x1xf32>
    %60 = vector.extract_strided_slice %23 {offsets = [6, 0], sizes = [1, 512], strides = [1, 1]} : vector<8x512xf32> to vector<1x512xf32>
    %61 = vector.broadcast %59 : vector<8x1xf32> to vector<8x512xf32>
    %62 = vector.broadcast %60 : vector<1x512xf32> to vector<8x512xf32>
    %63 = arith.mulf %61, %62 : vector<8x512xf32>
    %64 = arith.addf %58, %63 : vector<8x512xf32>
    %65 = vector.extract_strided_slice %4 {offsets = [0, 7], sizes = [8, 1], strides = [1, 1]} : vector<8x8xf32> to vector<8x1xf32>
    %66 = vector.extract_strided_slice %23 {offsets = [7, 0], sizes = [1, 512], strides = [1, 1]} : vector<8x512xf32> to vector<1x512xf32>
    %67 = vector.broadcast %65 : vector<8x1xf32> to vector<8x512xf32>
    %68 = vector.broadcast %66 : vector<1x512xf32> to vector<8x512xf32>
    %69 = arith.mulf %67, %68 : vector<8x512xf32>
    %70 = arith.addf %64, %69 : vector<8x512xf32>
    %cst_6 = arith.constant dense<0xFF800000> : vector<512xf32>
    %71 = vector.multi_reduction <maximumf>, %70, %cst_6 [0] : vector<8x512xf32> to vector<512xf32>
    %72 = vector.shape_cast %71 : vector<512xf32> to vector<1x512xf32>
    %73 = vector.broadcast %72 : vector<1x512xf32> to vector<8x512xf32>
    %74 = arith.subf %70, %73 : vector<8x512xf32>
    %75 = math.exp %74 : vector<8x512xf32>
    %cst_7 = arith.constant dense<0.000000e+00> : vector<512xf32>
    %76 = vector.multi_reduction <add>, %75, %cst_7 [0] : vector<8x512xf32> to vector<512xf32>
    %77 = vector.shape_cast %76 : vector<512xf32> to vector<1x512xf32>
    %c0_8 = arith.constant 0 : index
    %c0_9 = arith.constant 0 : index
    %c0_10 = arith.constant 0 : index
    %78 = vector.load %arg5[%c0_8, %c0_9, %c0_10] : memref<1x8x1xf32, #tpu.memory_space<vmem>>, vector<1x8x1xf32>
    %79 = vector.shape_cast %78 : vector<1x8x1xf32> to vector<8x1xf32>
    %80 = vector.broadcast %79 : vector<8x1xf32> to vector<8x512xf32>
    %81 = arith.mulf %75, %80 : vector<8x512xf32>
    %cst_11 = arith.constant dense<0.000000e+00> : vector<512xf32>
    %82 = vector.multi_reduction <add>, %81, %cst_11 [0] : vector<8x512xf32> to vector<512xf32>
    %83 = vector.shape_cast %82 : vector<512xf32> to vector<1x512xf32>
    %84 = tpu.reciprocal %77 {approx = true} : vector<1x512xf32> -> vector<1x512xf32>
    %85 = arith.mulf %83, %84 : vector<1x512xf32>
    %c0_12 = arith.constant 0 : index
    %c0_13 = arith.constant 0 : index
    %c0_14 = arith.constant 0 : index
    %86 = vector.load %arg6[%c0_12, %c0_13, %c0_14] : memref<1x1x512xf32, #tpu.memory_space<vmem>>, vector<1x1x512xf32>
    %87 = vector.shape_cast %86 : vector<1x1x512xf32> to vector<1x512xf32>
    %88 = vector.shape_cast %85 : vector<1x512xf32> to vector<1x1x512xf32>
    tpu.vector_store %arg6[%c0_12, %c0_13, %c0_14], %88 {strides = array<i32>} : memref<1x1x512xf32, #tpu.memory_space<vmem>>, vector<1x1x512xf32>,
    return
  }
  func.func @transform_0(%arg0: i32, %arg1: i32) -> (i32, i32, i32) {
    %c0_i32 = arith.constant 0 : i32
    %c0_i32_0 = arith.constant 0 : i32
    return %arg0, %c0_i32, %arg1 : i32, i32, i32
  }
  func.func @transform_1(%arg0: i32, %arg1: i32) -> (i32, i32) {
    %c0_i32 = arith.constant 0 : i32
    %c0_i32_0 = arith.constant 0 : i32
    %c0_i32_1 = arith.constant 0 : i32
    return %c0_i32, %c0_i32_0 : i32, i32
  }
  func.func @transform_2(%arg0: i32, %arg1: i32) -> (i32, i32) {
    %c0_i32 = arith.constant 0 : i32
    %c0_i32_0 = arith.constant 0 : i32
    %c0_i32_1 = arith.constant 0 : i32
    return %c0_i32, %c0_i32_0 : i32, i32
  }
  func.func @transform_3(%arg0: i32, %arg1: i32) -> (i32, i32, i32) {
    %c0_i32 = arith.constant 0 : i32
    %c0_i32_0 = arith.constant 0 : i32
    %c0_i32_1 = arith.constant 0 : i32
    return %arg0, %c0_i32, %c0_i32_0 : i32, i32, i32
  }
  func.func @transform_4(%arg0: i32, %arg1: i32) -> (i32, i32, i32) {
    %c0_i32 = arith.constant 0 : i32
    %c0_i32_0 = arith.constant 0 : i32
    return %arg0, %c0_i32, %arg1 : i32, i32, i32
  }
}

</mosaic_0001>

<llo_original>
// kernel: simple_interface_forward.1
$region0: #{simple_interface_forward.1}
  #allocation0 [shape = 'u32[]', space=smem, size = 0x4, offset = 0x4, fixed_abs, tag = 'smem constant byte address 0x4 - core index']
  #allocation1 [shape = 'u32[144,128]{1,0:T(1,128)}', space=vmem, size = 0x12000, scoped, tag = 'internal scratch']
  %s0 = inlined_call_operand.vmem [shape: bf16[2,3,1024], index: 0, kind: input, shape index: {}]
  %s1 = inlined_call_operand.vmem [shape: f32[8,3], index: 1, kind: input, shape index: {}]
  %s2 = inlined_call_operand.vmem [shape: f32[8,8], index: 2, kind: input, shape index: {}]
  %s3 = inlined_call_operand.vmem [shape: f32[2,8,1], index: 3, kind: input, shape index: {}]
  %s4 = inlined_call_operand.vmem [shape: f32[2,1,1024], index: 4, kind: output, shape index: {}]
  %s5 = sld [smem:[#allocation0]]
  $region49: #{simple_interface_forward.1} parent=0
    _
  %s7 = ssub.s32 1, %s5
  %s8 = scalar_select 0, %s7, %s5
  loop: start=0, step=1, limit=6
  $region2: #{simple_interface_forward.1} parent=0 // loop_pre_header
    _
  $region3: #{simple_interface_forward.1} parent=0 // loop_header
    %s10 = sphi 0, %s14
    %p11 = scmp.ge.s32.totalorder %s10, 6
    %s17 = sphi 0, %s29
    %s18 = sphi 0, %s25
    %s19 = sphi 0, %s17
    %s20 = sphi 0, %s18
    %s21 = sphi 0, %s19
    %s22 = sphi 0, %s20
    %s34 = sphi 0, %s36
    %s37 = sphi 0, %s34
    %s38 = sphi 0, %s37
    %s54 = sphi 0, %s38
    %s58 = sphi 0, %s58
    %s60 = sphi 0, %s58
    %s61 = sphi 0, %s60
    %s75 = sphi 0, %s61
    %s79 = sphi 0, %s79
    %s81 = sphi 0, %s79
    %s82 = sphi 0, %s81
    %s96 = sphi 0, %s82
    %s102 = sphi 0, %s104
    %s105 = sphi 0, %s102
    %s106 = sphi 0, %s105
    %s122 = sphi 0, %s106
    %s130 = sphi 0, %s132
    %s133 = sphi 0, %s130
    %s134 = sphi 0, %s133
    %s150 = sphi 0, %s134
  $region4: #{simple_interface_forward.1} parent=0 // loop_header_branch
    %13 = sbr.rel (%p11) target = $region8
  $region5: #{simple_interface_forward.1} parent=0 // loop_body
    %s15 = ssub.s32 %s10, 1
    %s16 = ssub.s32 %s10, 2
    %s23 = sadd.s32 1, %s18
    %p24 = scmp.ge.s32.totalorder %s23, 2
    %s25 = scalar_select %p24, 0, %s23
    %s26 = sadd.s32 1, %s17
    %s27 = scalar_select %p24, %s26, %s17
    %p28 = scmp.ge.s32.totalorder %s27, 2
    %s29 = scalar_select %p28, 0, %s27
    %s30 = ssub.s32 %s17, %s29
    %s31 = ssub.s32 %s18, %s25
    %s32 = sor.u32 %s30, %s31
    %p33 = scmp.eq.s32.totalorder %s32, 0
    %s35 = sadd.s32 %s34, 1
    %s36 = scalar_select %p33, %s34, %s35
    %p39 = pneg %p33
    %p40 = scmp.eq.s32.totalorder %s10, 3
    %p41 = por %p39, %p40
    %p42 = scmp.ne.s32.totalorder %s34, %s37
    %p43 = scmp.eq.s32.totalorder %s10, 0
    %p44 = por %p42, %p43
    %p45 = scmp.ne.s32.totalorder %s34, %s37
    %p46 = scmp.eq.s32.totalorder %s15, 3
    %p47 = por %p45, %p46
    %p48 = scmp.ne.s32.totalorder %s37, %s38
    %p49 = scmp.eq.s32.totalorder %s15, 0
    %p50 = por %p48, %p49
    %p51 = scmp.ne.s32.totalorder %s37, %s38
    %p52 = scmp.eq.s32.totalorder %s16, 3
    %p53 = por %p51, %p52
    %p55 = scmp.ne.s32.totalorder %s38, %s54
    %p56 = scmp.eq.s32.totalorder %s16, 0
    %p57 = por %p55, %p56
    %s59 = sadd.s32 %s58, 1
    %p62 = scmp.eq.s32.totalorder %s10, 3
    %p63 = scmp.ne.s32.totalorder %s58, %s60
    %p64 = scmp.eq.s32.totalorder %s10, 0
    %p65 = por %p63, %p64
    %p66 = scmp.ne.s32.totalorder %s58, %s60
    %p67 = scmp.eq.s32.totalorder %s15, 3
    %p68 = por %p66, %p67
    %p69 = scmp.ne.s32.totalorder %s60, %s61
    %p70 = scmp.eq.s32.totalorder %s15, 0
    %p71 = por %p69, %p70
    %p72 = scmp.ne.s32.totalorder %s60, %s61
    %p73 = scmp.eq.s32.totalorder %s16, 3
    %p74 = por %p72, %p73
    %p76 = scmp.ne.s32.totalorder %s61, %s75
    %p77 = scmp.eq.s32.totalorder %s16, 0
    %p78 = por %p76, %p77
    %s80 = sadd.s32 %s79, 1
    %p83 = scmp.eq.s32.totalorder %s10, 3
    %p84 = scmp.ne.s32.totalorder %s79, %s81
    %p85 = scmp.eq.s32.totalorder %s10, 0
    %p86 = por %p84, %p85
    %p87 = scmp.ne.s32.totalorder %s79, %s81
    %p88 = scmp.eq.s32.totalorder %s15, 3
    %p89 = por %p87, %p88
    %p90 = scmp.ne.s32.totalorder %s81, %s82
    %p91 = scmp.eq.s32.totalorder %s15, 0
    %p92 = por %p90, %p91
    %p93 = scmp.ne.s32.totalorder %s81, %s82
    %p94 = scmp.eq.s32.totalorder %s16, 3
    %p95 = por %p93, %p94
    %p97 = scmp.ne.s32.totalorder %s82, %s96
    %p98 = scmp.eq.s32.totalorder %s16, 0
    %p99 = por %p97, %p98
    %s100 = ssub.s32 %s17, %s29
    %p101 = scmp.eq.s32.totalorder %s100, 0
    %s103 = sadd.s32 %s102, 1
    %s104 = scalar_select %p101, %s102, %s103
    %p107 = pneg %p101
    %p108 = scmp.eq.s32.totalorder %s10, 3
    %p109 = por %p107, %p108
    %p110 = scmp.ne.s32.totalorder %s102, %s105
    %p111 = scmp.eq.s32.totalorder %s10, 0
    %p112 = por %p110, %p111
    %p113 = scmp.ne.s32.totalorder %s102, %s105
    %p114 = scmp.eq.s32.totalorder %s15, 3
    %p115 = por %p113, %p114
    %p116 = scmp.ne.s32.totalorder %s105, %s106
    %p117 = scmp.eq.s32.totalorder %s15, 0
    %p118 = por %p116, %p117
    %p119 = scmp.ne.s32.totalorder %s105, %s106
    %p120 = scmp.eq.s32.totalorder %s16, 3
    %p121 = por %p119, %p120
    %p123 = scmp.ne.s32.totalorder %s106, %s122
    %p124 = scmp.eq.s32.totalorder %s16, 0
    %p125 = por %p123, %p124
    %s126 = ssub.s32 %s17, %s29
    %s127 = ssub.s32 %s18, %s25
    %s128 = sor.u32 %s126, %s127
    %p129 = scmp.eq.s32.totalorder %s128, 0
    %s131 = sadd.s32 %s130, 1
    %s132 = scalar_select %p129, %s130, %s131
    %p135 = pneg %p129
    %p136 = scmp.eq.s32.totalorder %s10, 3
    %p137 = por %p135, %p136
    %p138 = scmp.ne.s32.totalorder %s130, %s133
    %p139 = scmp.eq.s32.totalorder %s10, 0
    %p140 = por %p138, %p139
    %p141 = scmp.ne.s32.totalorder %s130, %s133
    %p142 = scmp.eq.s32.totalorder %s15, 3
    %p143 = por %p141, %p142
    %p144 = scmp.ne.s32.totalorder %s133, %s134
    %p145 = scmp.eq.s32.totalorder %s15, 0
    %p146 = por %p144, %p145
    %p147 = scmp.ne.s32.totalorder %s133, %s134
    %p148 = scmp.eq.s32.totalorder %s16, 3
    %p149 = por %p147, %p148
    %p151 = scmp.ne.s32.totalorder %s134, %s150
    %p152 = scmp.eq.s32.totalorder %s16, 0
    %p153 = por %p151, %p152
    %p154 = scmp.le.s32.totalorder 1, %s10
    %p155 = scmp.lt.s32.totalorder %s10, 5
    %p156 = pnand %p154, %p155
    %p157 = pneg %p156
    // Predicated region
    $region9: #{simple_interface_forward.1} parent=5 // pred_check
      _
    $region10: #{simple_interface_forward.1} parent=5 // pred_check_branch
      %159 = sbr.rel (%p156) target = $region12
    $region11: #{simple_interface_forward.1} parent=5 // pred_region
      %s160 = ssub.s32 %s10, 1
      // Predicated region
      $region13: #{simple_interface_forward.1} parent=11 // pred_check
        %p161 = pneg %p71
      $region14: #{simple_interface_forward.1} parent=11 // pred_check_branch
        %163 = sbr.rel (%p161) target = $region16
      $region15: #{simple_interface_forward.1} parent=11 // pred_region
        _
      $region16: #{simple_interface_forward.1} parent=11 // pred_fallthru
        _
      // Predicated region
      $region17: #{simple_interface_forward.1} parent=11 // pred_check
        %p164 = pneg %p92
      $region18: #{simple_interface_forward.1} parent=11 // pred_check_branch
        %166 = sbr.rel (%p164) target = $region20
      $region19: #{simple_interface_forward.1} parent=11 // pred_region
        _
      $region20: #{simple_interface_forward.1} parent=11 // pred_fallthru
        _
    $region12: #{simple_interface_forward.1} parent=5 // pred_fallthru
      _
    %p167 = scmp.lt.s32.totalorder %s10, 4
    // Predicated region
    $region21: #{simple_interface_forward.1} parent=5 // pred_check
      %p168 = pneg %p167
    $region22: #{simple_interface_forward.1} parent=5 // pred_check_branch
      %170 = sbr.rel (%p168) target = $region24
    $region23: #{simple_interface_forward.1} parent=5 // pred_region
      // Predicated region
      $region25: #{simple_interface_forward.1} parent=23 // pred_check
        %p171 = pneg %p44
      $region26: #{simple_interface_forward.1} parent=23 // pred_check_branch
        %173 = sbr.rel (%p171) target = $region28
      $region27: #{simple_interface_forward.1} parent=23 // pred_region
        %s174 = smul.u32 4, %s18
        %p175 = scmp.lt.s32.totalorder %s17, 1
        %s176 = scalar_select %p175, %s17, 1
        %p177 = scmp.lt.s32.totalorder %s174, 7
        %s178 = scalar_select %p177, %s174, 7
        %s179 = smul.addr %s176, 8
        %s180 = sadd.s32 %s178, %s179
        %s181 = smul.addr %s180, 2
        %s182 = scalar_lea.vmem %s0, %s181
        %s183 = smul.u32 4, %s18
      $region28: #{simple_interface_forward.1} parent=23 // pred_fallthru
        _
      // Predicated region
      $region29: #{simple_interface_forward.1} parent=23 // pred_check
        %p184 = pneg %p112
      $region30: #{simple_interface_forward.1} parent=23 // pred_check_branch
        %186 = sbr.rel (%p184) target = $region32
      $region31: #{simple_interface_forward.1} parent=23 // pred_region
        %p187 = scmp.lt.s32.totalorder %s17, 1
        %s188 = scalar_select %p187, %s17, 1
        %s189 = smul.addr %s188, 8
        %s190 = scalar_lea.vmem %s3, %s189
      $region32: #{simple_interface_forward.1} parent=23 // pred_fallthru
        _
    $region24: #{simple_interface_forward.1} parent=5 // pred_fallthru
      _
    %p191 = scmp.le.s32.totalorder 1, %s10
    %p192 = scmp.lt.s32.totalorder %s10, 5
    %p193 = pnand %p191, %p192
    %p194 = pneg %p193
    // Predicated region
    $region33: #{simple_interface_forward.1} parent=5 // pred_check
      _
    $region34: #{simple_interface_forward.1} parent=5 // pred_check_branch
      %196 = sbr.rel (%p193) target = $region36
    $region35: #{simple_interface_forward.1} parent=5 // pred_region
      %s197 = ssub.s32 %s10, 1
      %s198 = smul.u32 4, %s20
      %p199 = scmp.lt.s32.totalorder %s19, 1
      %s200 = scalar_select %p199, %s19, 1
      %p201 = scmp.lt.s32.totalorder %s198, 7
      %s202 = scalar_select %p201, %s198, 7
      %s203 = smul.addr %s200, 8
      %s204 = sadd.s32 %s202, %s203
      %s205 = smul.addr %s204, 2
      %s206 = scalar_lea.vmem %s0, %s205
      %p207 = pneg %p50
      %p208 = pneg %p47
      %p209 = pneg %p71
      %p210 = pneg %p68
      %p211 = pneg %p92
      %p212 = pneg %p89
      %p213 = scmp.lt.s32.totalorder %s19, 1
      %s214 = scalar_select %p213, %s19, 1
      %s215 = smul.addr %s214, 8
      %s216 = scalar_lea.vmem %s3, %s215
      %p217 = pneg %p118
      %p218 = pneg %p115
      %p219 = pneg %p146
      %p220 = pneg %p143
      %s221 = smul.u32 4, %s20
      %p222 = scmp.lt.s32.totalorder %s19, 1
      %s223 = scalar_select %p222, %s19, 1
      %p224 = scmp.lt.s32.totalorder %s221, 7
      %s225 = scalar_select %p224, %s221, 7
      %s226 = smul.addr %s223, 8
      %s227 = sadd.s32 %s225, %s226
      %s228 = scalar_lea.vmem %s4, %s227
      %s229 = smul.u32 4, %s20
      %p230 = scmp.lt.s32.totalorder %s19, 1
      %s231 = scalar_select %p230, %s19, 1
      %p232 = scmp.lt.s32.totalorder %s229, 7
      %s233 = scalar_select %p232, %s229, 7
      %s234 = smul.addr %s231, 8
      %s235 = sadd.s32 %s233, %s234
      %s236 = smul.addr %s235, 2
      %s237 = scalar_lea.vmem %s0, %s236
      %s238 = smul.u32 4, %s20
      %p239 = scmp.lt.s32.totalorder %s19, 1
      %s240 = scalar_select %p239, %s19, 1
      %s241 = smul.addr %s240, 8
      %s242 = scalar_lea.vmem %s3, %s241
      %s243 = smul.u32 4, %s20
      %p244 = scmp.lt.s32.totalorder %s19, 1
      %s245 = scalar_select %p244, %s19, 1
      %p246 = scmp.lt.s32.totalorder %s243, 7
      %s247 = scalar_select %p246, %s243, 7
      %s248 = smul.addr %s245, 8
      %s249 = sadd.s32 %s247, %s248
      %s250 = scalar_lea.vmem %s4, %s249
      %s251 = smul.u32 4, %s20
      %v252 = vld [vmem:[%s237] sm:$0xff]
      %v253 = vunpack.c.l.bf16 %v252
      %v254 = vunpack.c.h.bf16 %v252
      %v255 = vld [vmem:[%s1] sm:$0xff]
      %v256 = vld [vmem:[%s2] sm:$0xff]
      %258 = vset.pattern.permute.xlu0 0
      %259 = vperm.xlu0 %258, %v255
      %v260 = vpop.permute.xlu0 %259
      %v264 = vlaneseq
      %v265 = vshrl.u32 %v264, 7
      %v266 = vsub.s32 0, %v265
      %v267 = vrot.slane %v253, %v266
      %v268 = vlaneseq
      %v269 = vshrl.u32 %v268, 7
      %v270 = vsub.s32 4, %v269
      %v271 = vrot.slane %v253, %v270
      %v272 = vlaneseq
      %v273 = vshrl.u32 %v272, 7
      %v274 = vsub.s32 0, %v273
      %v275 = vrot.slane %v254, %v274
      %v276 = vlaneseq
      %v277 = vshrl.u32 %v276, 7
      %v278 = vsub.s32 4, %v277
      %v279 = vrot.slane %v254, %v278
      %v284 = vlaneseq
      %v285 = vshrl.u32 %v284, 7
      %v286 = vsub.s32 0, %v285
      %v287 = vrot.slane %v267, %v286
      %v288 = vlaneseq
      %v289 = vshrl.u32 %v288, 7
      %v290 = vsub.s32 0, %v289
      %v291 = vrot.slane %v271, %v290
      %v292 = vlaneseq
      %v293 = vshrl.u32 %v292, 7
      %v294 = vsub.s32 0, %v293
      %v295 = vrot.slane %v275, %v294
      %v296 = vlaneseq
      %v297 = vshrl.u32 %v296, 7
      %v298 = vsub.s32 0, %v297
      %v299 = vrot.slane %v279, %v298
      %v300 = vmul.f32 %v260, %v287
      %v301 = vmul.f32 %v260, %v291
      %v302 = vmul.f32 %v260, %v295
      %v303 = vmul.f32 %v260, %v299
      %304 = vset.pattern.permute.xlu0 1
      %305 = vperm.xlu0 %304, %v255
      %v306 = vpop.permute.xlu0 %305
      %v308 = vlaneseq
      %v309 = vshrl.u32 %v308, 7
      %v310 = vsub.s32 1, %v309
      %v311 = vrot.slane %v253, %v310
      %v312 = vlaneseq
      %v313 = vshrl.u32 %v312, 7
      %v314 = vsub.s32 5, %v313
      %v315 = vrot.slane %v253, %v314
      %v316 = vlaneseq
      %v317 = vshrl.u32 %v316, 7
      %v318 = vsub.s32 1, %v317
      %v319 = vrot.slane %v254, %v318
      %v320 = vlaneseq
      %v321 = vshrl.u32 %v320, 7
      %v322 = vsub.s32 5, %v321
      %v323 = vrot.slane %v254, %v322
      %v328 = vlaneseq
      %v329 = vshrl.u32 %v328, 7
      %v330 = vsub.s32 1, %v329
      %v331 = vrot.slane %v311, %v330
      %v332 = vlaneseq
      %v333 = vshrl.u32 %v332, 7
      %v334 = vsub.s32 1, %v333
      %v335 = vrot.slane %v315, %v334
      %v336 = vlaneseq
      %v337 = vshrl.u32 %v336, 7
      %v338 = vsub.s32 1, %v337
      %v339 = vrot.slane %v319, %v338
      %v340 = vlaneseq
      %v341 = vshrl.u32 %v340, 7
      %v342 = vsub.s32 1, %v341
      %v343 = vrot.slane %v323, %v342
      %v344 = vmul.f32 %v306, %v331
      %v345 = vmul.f32 %v306, %v335
      %v346 = vmul.f32 %v306, %v339
      %v347 = vmul.f32 %v306, %v343
      %v348 = vadd.f32 %v300, %v344
      %v349 = vadd.f32 %v301, %v345
      %v350 = vadd.f32 %v302, %v346
      %v351 = vadd.f32 %v303, %v347
      %352 = vset.pattern.permute.xlu0 2
      %353 = vperm.xlu0 %352, %v255
      %v354 = vpop.permute.xlu0 %353
      %v356 = vlaneseq
      %v357 = vshrl.u32 %v356, 7
      %v358 = vsub.s32 2, %v357
      %v359 = vrot.slane %v253, %v358
      %v360 = vlaneseq
      %v361 = vshrl.u32 %v360, 7
      %v362 = vsub.s32 6, %v361
      %v363 = vrot.slane %v253, %v362
      %v364 = vlaneseq
      %v365 = vshrl.u32 %v364, 7
      %v366 = vsub.s32 2, %v365
      %v367 = vrot.slane %v254, %v366
      %v368 = vlaneseq
      %v369 = vshrl.u32 %v368, 7
      %v370 = vsub.s32 6, %v369
      %v371 = vrot.slane %v254, %v370
      %v376 = vlaneseq
      %v377 = vshrl.u32 %v376, 7
      %v378 = vsub.s32 2, %v377
      %v379 = vrot.slane %v359, %v378
      %v380 = vlaneseq
      %v381 = vshrl.u32 %v380, 7
      %v382 = vsub.s32 2, %v381
      %v383 = vrot.slane %v363, %v382
      %v384 = vlaneseq
      %v385 = vshrl.u32 %v384, 7
      %v386 = vsub.s32 2, %v385
      %v387 = vrot.slane %v367, %v386
      %v388 = vlaneseq
      %v389 = vshrl.u32 %v388, 7
      %v390 = vsub.s32 2, %v389
      %v391 = vrot.slane %v371, %v390
      %v392 = vmul.f32 %v354, %v379
      %v393 = vmul.f32 %v354, %v383
      %v394 = vmul.f32 %v354, %v387
      %v395 = vmul.f32 %v354, %v391
      %v396 = vadd.f32 %v348, %v392
      %v397 = vadd.f32 %v349, %v393
      %v398 = vadd.f32 %v350, %v394
      %v399 = vadd.f32 %v351, %v395
      %v400 = vmax.f32 %v396, 0.0
      %v401 = vmax.f32 %v397, 0.0
      %v402 = vmax.f32 %v398, 0.0
      %v403 = vmax.f32 %v399, 0.0
      %405 = vset.pattern.permute.xlu0 0
      %406 = vperm.xlu0 %405, %v256
      %v407 = vpop.permute.xlu0 %406
      %v409 = vlaneseq
      %v410 = vshrl.u32 %v409, 7
      %v411 = vsub.s32 0, %v410
      %v412 = vrot.slane %v400, %v411
      %v413 = vlaneseq
      %v414 = vshrl.u32 %v413, 7
      %v415 = vsub.s32 0, %v414
      %v416 = vrot.slane %v401, %v415
      %v417 = vlaneseq
      %v418 = vshrl.u32 %v417, 7
      %v419 = vsub.s32 0, %v418
      %v420 = vrot.slane %v402, %v419
      %v421 = vlaneseq
      %v422 = vshrl.u32 %v421, 7
      %v423 = vsub.s32 0, %v422
      %v424 = vrot.slane %v403, %v423
      %v425 = vmul.f32 %v407, %v412
      %v426 = vmul.f32 %v407, %v416
      %v427 = vmul.f32 %v407, %v420
      %v428 = vmul.f32 %v407, %v424
      %429 = vset.pattern.permute.xlu0 1
      %430 = vperm.xlu0 %429, %v256
      %v431 = vpop.permute.xlu0 %430
      %v433 = vlaneseq
      %v434 = vshrl.u32 %v433, 7
      %v435 = vsub.s32 1, %v434
      %v436 = vrot.slane %v400, %v435
      %v437 = vlaneseq
      %v438 = vshrl.u32 %v437, 7
      %v439 = vsub.s32 1, %v438
      %v440 = vrot.slane %v401, %v439
      %v441 = vlaneseq
      %v442 = vshrl.u32 %v441, 7
      %v443 = vsub.s32 1, %v442
      %v444 = vrot.slane %v402, %v443
      %v445 = vlaneseq
      %v446 = vshrl.u32 %v445, 7
      %v447 = vsub.s32 1, %v446
      %v448 = vrot.slane %v403, %v447
      %v449 = vmul.f32 %v431, %v436
      %v450 = vmul.f32 %v431, %v440
      %v451 = vmul.f32 %v431, %v444
      %v452 = vmul.f32 %v431, %v448
      %v453 = vadd.f32 %v425, %v449
      %v454 = vadd.f32 %v426, %v450
      %v455 = vadd.f32 %v427, %v451
      %v456 = vadd.f32 %v428, %v452
      %457 = vset.pattern.permute.xlu0 2
      %458 = vperm.xlu0 %457, %v256
      %v459 = vpop.permute.xlu0 %458
      %v461 = vlaneseq
      %v462 = vshrl.u32 %v461, 7
      %v463 = vsub.s32 2, %v462
      %v464 = vrot.slane %v400, %v463
      %v465 = vlaneseq
      %v466 = vshrl.u32 %v465, 7
      %v467 = vsub.s32 2, %v466
      %v468 = vrot.slane %v401, %v467
      %v469 = vlaneseq
      %v470 = vshrl.u32 %v469, 7
      %v471 = vsub.s32 2, %v470
      %v472 = vrot.slane %v402, %v471
      %v473 = vlaneseq
      %v474 = vshrl.u32 %v473, 7
      %v475 = vsub.s32 2, %v474
      %v476 = vrot.slane %v403, %v475
      %v477 = vmul.f32 %v459, %v464
      %v478 = vmul.f32 %v459, %v468
      %v479 = vmul.f32 %v459, %v472
      %v480 = vmul.f32 %v459, %v476
      %v481 = vadd.f32 %v453, %v477
      %v482 = vadd.f32 %v454, %v478
      %v483 = vadd.f32 %v455, %v479
      %v484 = vadd.f32 %v456, %v480
      %485 = vset.pattern.permute.xlu0 3
      %486 = vperm.xlu0 %485, %v256
      %v487 = vpop.permute.xlu0 %486
      %v489 = vlaneseq
      %v490 = vshrl.u32 %v489, 7
      %v491 = vsub.s32 3, %v490
      %v492 = vrot.slane %v400, %v491
      %v493 = vlaneseq
      %v494 = vshrl.u32 %v493, 7
      %v495 = vsub.s32 3, %v494
      %v496 = vrot.slane %v401, %v495
      %v497 = vlaneseq
      %v498 = vshrl.u32 %v497, 7
      %v499 = vsub.s32 3, %v498
      %v500 = vrot.slane %v402, %v499
      %v501 = vlaneseq
      %v502 = vshrl.u32 %v501, 7
      %v503 = vsub.s32 3, %v502
      %v504 = vrot.slane %v403, %v503
      %v505 = vmul.f32 %v487, %v492
      %v506 = vmul.f32 %v487, %v496
      %v507 = vmul.f32 %v487, %v500
      %v508 = vmul.f32 %v487, %v504
      %v509 = vadd.f32 %v481, %v505
      %v510 = vadd.f32 %v482, %v506
      %v511 = vadd.f32 %v483, %v507
      %v512 = vadd.f32 %v484, %v508
      %513 = vset.pattern.permute.xlu0 4
      %514 = vperm.xlu0 %513, %v256
      %v515 = vpop.permute.xlu0 %514
      %v517 = vlaneseq
      %v518 = vshrl.u32 %v517, 7
      %v519 = vsub.s32 4, %v518
      %v520 = vrot.slane %v400, %v519
      %v521 = vlaneseq
      %v522 = vshrl.u32 %v521, 7
      %v523 = vsub.s32 4, %v522
      %v524 = vrot.slane %v401, %v523
      %v525 = vlaneseq
      %v526 = vshrl.u32 %v525, 7
      %v527 = vsub.s32 4, %v526
      %v528 = vrot.slane %v402, %v527
      %v529 = vlaneseq
      %v530 = vshrl.u32 %v529, 7
      %v531 = vsub.s32 4, %v530
      %v532 = vrot.slane %v403, %v531
      %v533 = vmul.f32 %v515, %v520
      %v534 = vmul.f32 %v515, %v524
      %v535 = vmul.f32 %v515, %v528
      %v536 = vmul.f32 %v515, %v532
      %v537 = vadd.f32 %v509, %v533
      %v538 = vadd.f32 %v510, %v534
      %v539 = vadd.f32 %v511, %v535
      %v540 = vadd.f32 %v512, %v536
      %541 = vset.pattern.permute.xlu0 5
      %542 = vperm.xlu0 %541, %v256
      %v543 = vpop.permute.xlu0 %542
      %v545 = vlaneseq
      %v546 = vshrl.u32 %v545, 7
      %v547 = vsub.s32 5, %v546
      %v548 = vrot.slane %v400, %v547
      %v549 = vlaneseq
      %v550 = vshrl.u32 %v549, 7
      %v551 = vsub.s32 5, %v550
      %v552 = vrot.slane %v401, %v551
      %v553 = vlaneseq
      %v554 = vshrl.u32 %v553, 7
      %v555 = vsub.s32 5, %v554
      %v556 = vrot.slane %v402, %v555
      %v557 = vlaneseq
      %v558 = vshrl.u32 %v557, 7
      %v559 = vsub.s32 5, %v558
      %v560 = vrot.slane %v403, %v559
      %v561 = vmul.f32 %v543, %v548
      %v562 = vmul.f32 %v543, %v552
      %v563 = vmul.f32 %v543, %v556
      %v564 = vmul.f32 %v543, %v560
      %v565 = vadd.f32 %v537, %v561
      %v566 = vadd.f32 %v538, %v562
      %v567 = vadd.f32 %v539, %v563
      %v568 = vadd.f32 %v540, %v564
      %569 = vset.pattern.permute.xlu0 6
      %570 = vperm.xlu0 %569, %v256
      %v571 = vpop.permute.xlu0 %570
      %v573 = vlaneseq
      %v574 = vshrl.u32 %v573, 7
      %v575 = vsub.s32 6, %v574
      %v576 = vrot.slane %v400, %v575
      %v577 = vlaneseq
      %v578 = vshrl.u32 %v577, 7
      %v579 = vsub.s32 6, %v578
      %v580 = vrot.slane %v401, %v579
      %v581 = vlaneseq
      %v582 = vshrl.u32 %v581, 7
      %v583 = vsub.s32 6, %v582
      %v584 = vrot.slane %v402, %v583
      %v585 = vlaneseq
      %v586 = vshrl.u32 %v585, 7
      %v587 = vsub.s32 6, %v586
      %v588 = vrot.slane %v403, %v587
      %v589 = vmul.f32 %v571, %v576
      %v590 = vmul.f32 %v571, %v580
      %v591 = vmul.f32 %v571, %v584
      %v592 = vmul.f32 %v571, %v588
      %v593 = vadd.f32 %v565, %v589
      %v594 = vadd.f32 %v566, %v590
      %v595 = vadd.f32 %v567, %v591
      %v596 = vadd.f32 %v568, %v592
      %597 = vset.pattern.permute.xlu0 7
      %598 = vperm.xlu0 %597, %v256
      %v599 = vpop.permute.xlu0 %598
      %v601 = vlaneseq
      %v602 = vshrl.u32 %v601, 7
      %v603 = vsub.s32 7, %v602
      %v604 = vrot.slane %v400, %v603
      %v605 = vlaneseq
      %v606 = vshrl.u32 %v605, 7
      %v607 = vsub.s32 7, %v606
      %v608 = vrot.slane %v401, %v607
      %v609 = vlaneseq
      %v610 = vshrl.u32 %v609, 7
      %v611 = vsub.s32 7, %v610
      %v612 = vrot.slane %v402, %v611
      %v613 = vlaneseq
      %v614 = vshrl.u32 %v613, 7
      %v615 = vsub.s32 7, %v614
      %v616 = vrot.slane %v403, %v615
      %v617 = vmul.f32 %v599, %v604
      %v618 = vmul.f32 %v599, %v608
      %v619 = vmul.f32 %v599, %v612
      %v620 = vmul.f32 %v599, %v616
      %v621 = vadd.f32 %v593, %v617
      %v622 = vadd.f32 %v594, %v618
      %v623 = vadd.f32 %v595, %v619
      %v624 = vadd.f32 %v596, %v620
      %v625 = vrot.slane %v621, 4
      %v626 = vmax.f32 %v621, %v625
      %v627 = vrot.slane %v626, 2
      %v628 = vmax.f32 %v626, %v627
      %v629 = vrot.slane %v628, 1
      %v630 = vmax.f32 %v628, %v629
      %v631 = vrot.slane %v622, 4
      %v632 = vmax.f32 %v622, %v631
      %v633 = vrot.slane %v632, 2
      %v634 = vmax.f32 %v632, %v633
      %v635 = vrot.slane %v634, 1
      %v636 = vmax.f32 %v634, %v635
      %v637 = vrot.slane %v623, 4
      %v638 = vmax.f32 %v623, %v637
      %v639 = vrot.slane %v638, 2
      %v640 = vmax.f32 %v638, %v639
      %v641 = vrot.slane %v640, 1
      %v642 = vmax.f32 %v640, %v641
      %v643 = vrot.slane %v624, 4
      %v644 = vmax.f32 %v624, %v643
      %v645 = vrot.slane %v644, 2
      %v646 = vmax.f32 %v644, %v645
      %v647 = vrot.slane %v646, 1
      %v648 = vmax.f32 %v646, %v647
      %v649 = vsub.f32 %v621, %v630
      %v650 = vsub.f32 %v622, %v636
      %v651 = vsub.f32 %v623, %v642
      %v652 = vsub.f32 %v624, %v648
      %v653 = vmul.f32 %v649, 1.442695
      %v654 = vpow.pop %v653
      %v655 = vmul.f32 %v650, 1.442695
      %v656 = vpow.pop %v655
      %v657 = vmul.f32 %v651, 1.442695
      %v658 = vpow.pop %v657
      %v659 = vmul.f32 %v652, 1.442695
      %v660 = vpow.pop %v659
      %v661 = vrot.slane %v654, 4
      %v662 = vadd.f32 %v654, %v661
      %v663 = vrot.slane %v662, 2
      %v664 = vadd.f32 %v662, %v663
      %v665 = vrot.slane %v664, 1
      %v666 = vadd.f32 %v664, %v665
      %v667 = vrot.slane %v656, 4
      %v668 = vadd.f32 %v656, %v667
      %v669 = vrot.slane %v668, 2
      %v670 = vadd.f32 %v668, %v669
      %v671 = vrot.slane %v670, 1
      %v672 = vadd.f32 %v670, %v671
      %v673 = vrot.slane %v658, 4
      %v674 = vadd.f32 %v658, %v673
      %v675 = vrot.slane %v674, 2
      %v676 = vadd.f32 %v674, %v675
      %v677 = vrot.slane %v676, 1
      %v678 = vadd.f32 %v676, %v677
      %v679 = vrot.slane %v660, 4
      %v680 = vadd.f32 %v660, %v679
      %v681 = vrot.slane %v680, 2
      %v682 = vadd.f32 %v680, %v681
      %v683 = vrot.slane %v682, 1
      %v684 = vadd.f32 %v682, %v683
      %v685 = vld [vmem:[%s242] sm:$0xff]
      %687 = vset.pattern.permute.xlu0 0
      %688 = vperm.xlu0 %687, %v685
      %v689 = vpop.permute.xlu0 %688
      %v691 = vmul.f32 %v654, %v689
      %v692 = vmul.f32 %v656, %v689
      %v693 = vmul.f32 %v658, %v689
      %v694 = vmul.f32 %v660, %v689
      %v695 = vrot.slane %v691, 4
      %v696 = vadd.f32 %v691, %v695
      %v697 = vrot.slane %v696, 2
      %v698 = vadd.f32 %v696, %v697
      %v699 = vrot.slane %v698, 1
      %v700 = vadd.f32 %v698, %v699
      %v701 = vrot.slane %v692, 4
      %v702 = vadd.f32 %v692, %v701
      %v703 = vrot.slane %v702, 2
      %v704 = vadd.f32 %v702, %v703
      %v705 = vrot.slane %v704, 1
      %v706 = vadd.f32 %v704, %v705
      %v707 = vrot.slane %v693, 4
      %v708 = vadd.f32 %v693, %v707
      %v709 = vrot.slane %v708, 2
      %v710 = vadd.f32 %v708, %v709
      %v711 = vrot.slane %v710, 1
      %v712 = vadd.f32 %v710, %v711
      %v713 = vrot.slane %v694, 4
      %v714 = vadd.f32 %v694, %v713
      %v715 = vrot.slane %v714, 2
      %v716 = vadd.f32 %v714, %v715
      %v717 = vrot.slane %v716, 1
      %v718 = vadd.f32 %v716, %v717
      %v719 = vrcp.pop %v666
      %v720 = vrcp.pop %v672
      %v721 = vrcp.pop %v678
      %v722 = vrcp.pop %v684
      %v723 = vmul.f32 %v700, %v719
      %v724 = vmul.f32 %v706, %v720
      %v725 = vmul.f32 %v712, %v721
      %v726 = vmul.f32 %v718, %v722
      %v731 = vcombine.low %v723, %v724
      %v732 = vcombine.low %v725, %v726
      %v734 = vunpack.c.l.s4 1966171168
      %v735 = vunpack.c.0.s8 %v734
      %v736 = vlaneseq
      %v737 = vshrl.u32 %v736, 7
      %v738 = vsub.s32 %v735, %v737
      %v739 = vrot.slane %v731, %v738
      %v741 = vunpack.c.l.s4 1966171168
      %v742 = vunpack.c.0.s8 %v741
      %v743 = vlaneseq
      %v744 = vshrl.u32 %v743, 7
      %v745 = vsub.s32 %v742, %v744
      %v746 = vrot.slane %v732, %v745
      %v747 = vcombine.low %v739, %v746
      %v749 = vunpack.c.l.s4 1966171168
      %v750 = vunpack.c.0.s8 %v749
      %v751 = vlaneseq
      %v752 = vshrl.u32 %v751, 7
      %v753 = vsub.s32 %v750, %v752
      %v754 = vrot.slane %v747, %v753
      %v756 = vlaneseq
      %vm757 = vcmp.ge.s32.totalorder %v756, 0
      %vm758 = vcmp.lt.s32.totalorder %v756, 512
      %vm759 = vmand %vm757, %vm758
      %760 = vst.msk [vmem:[%s250] sm:$0xf] %vm759, %v754
      %s761 = smul.u32 4, %s20
      %p762 = scmp.lt.s32.totalorder %s19, 1
      %s763 = scalar_select %p762, %s19, 1
      %p764 = scmp.lt.s32.totalorder %s761, 7
      %s765 = scalar_select %p764, %s761, 7
      %s766 = smul.addr %s763, 8
      %s767 = sadd.s32 %s765, %s766
      %s768 = scalar_lea.vmem %s4, %s767
      // Predicated region
      $region37: #{simple_interface_forward.1} parent=35 // pred_check
        %p769 = pneg %p143
      $region38: #{simple_interface_forward.1} parent=35 // pred_check_branch
        %771 = sbr.rel (%p769) target = $region40
      $region39: #{simple_interface_forward.1} parent=35 // pred_region
        %s772 = smul.u32 4, %s20
      $region40: #{simple_interface_forward.1} parent=35 // pred_fallthru
        _
    $region36: #{simple_interface_forward.1} parent=5 // pred_fallthru
      _
    %p773 = scmp.le.s32.totalorder 2, %s10
    // Predicated region
    $region41: #{simple_interface_forward.1} parent=5 // pred_check
      %p774 = pneg %p773
    $region42: #{simple_interface_forward.1} parent=5 // pred_check_branch
      %776 = sbr.rel (%p774) target = $region44
    $region43: #{simple_interface_forward.1} parent=5 // pred_region
      %s777 = ssub.s32 %s10, 2
      // Predicated region
      $region45: #{simple_interface_forward.1} parent=43 // pred_check
        %p778 = pneg %p149
      $region46: #{simple_interface_forward.1} parent=43 // pred_check_branch
        %780 = sbr.rel (%p778) target = $region48
      $region47: #{simple_interface_forward.1} parent=43 // pred_region
        %s781 = smul.u32 4, %s22
        %p782 = scmp.lt.s32.totalorder %s21, 1
        %s783 = scalar_select %p782, %s21, 1
        %p784 = scmp.lt.s32.totalorder %s781, 7
        %s785 = scalar_select %p784, %s781, 7
        %s786 = smul.addr %s783, 8
        %s787 = sadd.s32 %s785, %s786
        %s788 = scalar_lea.vmem %s4, %s787
      $region48: #{simple_interface_forward.1} parent=43 // pred_fallthru
        _
    $region44: #{simple_interface_forward.1} parent=5 // pred_fallthru
      _
  $region6: #{simple_interface_forward.1} parent=0 // loop_footer
    %s14 = sadd.s32 1, %s10
  $region7: #{simple_interface_forward.1} parent=0 // loop_footer_branch
    %9 = sbr.rel target = $region3
  $region8: #{simple_interface_forward.1} parent=0 // loop_exit
    _

</llo_original>
